<compile_context>
chip_gen: v7x
topology: tpu7x:2x2x1
jax: 0.10.0
libtpu: 0.0.40
codegen_flags: <defaults>
</compile_context>

<pallas_src>
import jax
import jax.numpy as jnp
from jax.experimental import pallas as pl
from jax.experimental.pallas import tpu as pltpu


def _conv_bn_relu_kernel(x_ref, w_ref, bias_ref, o_ref):
    # x_ref:    (B, Hp, Wp*C_in)            bf16  zero-padded images, (w,cin) in lanes
    # w_ref:    (KH, Wp*C_in, W_out*C_out)  bf16  banded, BN-scale-folded weights
    # bias_ref: (1, W_out*C_out)            f32   (conv_bias - mean)*scale + beta, tiled
    # o_ref:    (B, H_out, W_out*C_out)     f32   lane-dense output
    batch, h_out, lanes = o_ref.shape
    kh_size = w_ref.shape[0]

    # Hoisted once per grid step: bias broadcast to the output tile shape.
    bias_tile = jnp.broadcast_to(bias_ref[...], (h_out, lanes)).astype(jnp.float32)

    for b in range(batch):                       # unrolled; images_per_block is small
        acc = bias_tile                          # bias folded into the accumulator init
        for kh in range(kh_size):
            # Contiguous sublane window: rows kh .. kh+H_out-1 of the padded image.
            rows = x_ref[b, pl.ds(kh, h_out), :]
            acc = acc + jnp.dot(rows, w_ref[kh],
                                preferred_element_type=jnp.float32)
        # Epilogue: ReLU only; lane-dense store.
        o_ref[b] = jnp.maximum(acc, 0.0).astype(o_ref.dtype)


def _pick_images_per_block(n, hp, k_dim, n_out, h_out, kh, vmem_budget=24 << 20):
    """Largest divisor of n whose double-buffered block footprint fits the budget."""
    per_image = (hp * k_dim * 2 + h_out * n_out * 4) * 2     # in + out, double-buffered
    fixed = kh * k_dim * n_out * 2 * 2 + n_out * 4 * 2       # weights + bias
    best = 1
    for bt in range(1, n + 1):
        if n % bt == 0 and fixed + bt * per_image <= vmem_budget:
            best = bt
    return best


def conv_bn_relu(x_nchw, weight, conv_bias, gamma, beta, running_mean,
                 running_var, *, eps=1e-5, stride=1, padding=1,
                 images_per_block=None):
    """x_nchw: (N, C_in, H, W); weight: (C_out, C_in, KH, KW). Returns NCHW f32."""
    assert stride == 1, "only stride=1 supported"
    N, C_in, H, W = x_nchw.shape
    C_out, _, KH, KW = weight.shape

    Hp, Wp = H + 2 * padding, W + 2 * padding
    H_out, W_out = Hp - KH + 1, Wp - KW + 1
    K_dim = Wp * C_in
    N_out = W_out * C_out

    if images_per_block is None:
        images_per_block = _pick_images_per_block(N, Hp, K_dim, N_out, H_out, KH)
    assert N % images_per_block == 0
    Bt = images_per_block

    # ---- fold BN (eval mode) into weights / bias: done once, tiny ----
    scale = gamma / jnp.sqrt(running_var + eps)                  # (C_out,)
    bias = (conv_bias - running_mean) * scale + beta             # (C_out,)
    w_fold = jnp.transpose(weight, (2, 3, 1, 0)) * scale         # (KH,KW,Cin,Cout)

    # ---- banded matmul RHS per kh tap ----
    # B[kh, p*C_in + ci, j*C_out + co] = w_fold[kh, p - j, ci, co] if 0 <= p-j < KW else 0
    p = jnp.arange(Wp)
    j = jnp.arange(W_out)
    kw = p[:, None] - j[None, :]                                 # (Wp, W_out)
    valid = (kw >= 0) & (kw < KW)
    wg = w_fold[:, jnp.clip(kw, 0, KW - 1)]                      # (KH, Wp, W_out, Cin, Cout)
    wg = jnp.where(valid[None, :, :, None, None], wg, 0.0)
    w_band = wg.transpose(0, 1, 3, 2, 4).reshape(KH, K_dim, N_out)
    w_band = w_band.astype(jnp.bfloat16)
    bias_row = jnp.tile(bias, W_out).reshape(1, N_out).astype(jnp.float32)

    # ---- layout: NCHW -> NHWC, zero-pad, merge (W, C_in) into lanes, bf16 ----
    x_nhwc = jnp.transpose(x_nchw, (0, 2, 3, 1))
    x_pad = jnp.pad(x_nhwc, ((0, 0), (padding, padding), (padding, padding), (0, 0)))
    x2d = x_pad.reshape(N, Hp, K_dim).astype(jnp.bfloat16)

    flops = 2 * N * KH * H_out * K_dim * N_out
    bytes_accessed = (x2d.size * 2 + w_band.size * 2 + bias_row.size * 4
                      + N * H_out * N_out * 4)

    out = pl.pallas_call(
        _conv_bn_relu_kernel,
        out_shape=jax.ShapeDtypeStruct((N, H_out, N_out), jnp.float32),
        grid_spec=pltpu.PrefetchScalarGridSpec(
            num_scalar_prefetch=0,
            grid=(N // Bt,),
            in_specs=[
                pl.BlockSpec((Bt, Hp, K_dim), lambda g: (g, 0, 0)),
                pl.BlockSpec((KH, K_dim, N_out), lambda g: (0, 0, 0)),
                pl.BlockSpec((1, N_out), lambda g: (0, 0)),
            ],
            out_specs=pl.BlockSpec((Bt, H_out, N_out), lambda g: (g, 0, 0)),
        ),
        compiler_params=pltpu.CompilerParams(
            dimension_semantics=("parallel",),
            vmem_limit_bytes=32 * 1024 * 1024,
        ),
        cost_estimate=pl.CostEstimate(
            flops=flops, transcendentals=0, bytes_accessed=bytes_accessed),
    )(x2d, w_band, bias_row)

    out_nhwc = out.reshape(N, H_out, W_out, C_out)
    return jnp.transpose(out_nhwc, (0, 3, 1, 2))                 # back to NCHW


def _reference(x_nchw, weight, conv_bias, gamma, beta, running_mean,
               running_var, eps=1e-5):
    y = jax.lax.conv_general_dilated(
        x_nchw.astype(jnp.float32), weight.astype(jnp.float32),
        window_strides=(1, 1), padding=((1, 1), (1, 1)),
        dimension_numbers=("NCHW", "OIHW", "NCHW"),
    )
    y = y + conv_bias[None, :, None, None]
    scale = gamma / jnp.sqrt(running_var + eps)
    y = (y - running_mean[None, :, None, None]) * scale[None, :, None, None] \
        + beta[None, :, None, None]
    return jnp.maximum(y, 0.0)


if __name__ == "__main__":
    key = jax.random.PRNGKey(0)
    k_x, k_w, k_b, k_g, k_be, k_m, k_v = jax.random.split(key, 7)

    N, C_in, C_out, H, W = 2, 4, 8, 16, 16
    KH = KW = 3

    x = jax.random.normal(k_x, (N, C_in, H, W), jnp.float32)
    weight = jax.random.normal(k_w, (C_out, C_in, KH, KW), jnp.float32) * 0.1
    conv_bias = jax.random.normal(k_b, (C_out,), jnp.float32) * 0.1
    gamma = 1.0 + 0.1 * jax.random.normal(k_g, (C_out,), jnp.float32)
    beta = 0.1 * jax.random.normal(k_be, (C_out,), jnp.float32)
    running_mean = 0.1 * jax.random.normal(k_m, (C_out,), jnp.float32)
    running_var = jnp.abs(jax.random.normal(k_v, (C_out,), jnp.float32)) + 0.5

    out = conv_bn_relu(x, weight, conv_bias, gamma, beta,
                       running_mean, running_var)
    out = jax.block_until_ready(out)

    ref = _reference(x, weight, conv_bias, gamma, beta,
                     running_mean, running_var)
    assert out.shape == (N, C_out, H, W)
    # bf16 operands with f32 accumulation vs an all-f32 reference -> relaxed tolerance.
    assert jnp.allclose(out, ref, atol=5e-2, rtol=5e-2), "mismatch vs reference"

    print("KERNEL_OK")
</pallas_src>

<mosaic_0001>
module attributes {stable_mosaic.version = 11 : i64} {
  func.func @_conv_bn_relu_kernel(%arg0: i32, %arg1: memref<2x18x72xbf16, #tpu.memory_space<vmem>>, %arg2: memref<3x72x128xbf16, #tpu.memory_space<vmem>>, %arg3: memref<1x128xf32, #tpu.memory_space<vmem>>, %arg4: memref<2x16x128xf32, #tpu.memory_space<vmem>>) attributes {dimension_semantics = [#tpu.dimension_semantics<parallel>], iteration_bounds = array<i64: 1>, scalar_prefetch = 0 : i64, scratch_operands = 0 : i64, tpu.core_type = #tpu.core_type<tc>, window_params = [{transform_indices = @transform_0, window_bounds = array<i64: 2, 18, 72>}, {pipeline_mode = #tpu.pipeline_mode<synchronous>, transform_indices = @transform_1, window_bounds = array<i64: 3, 72, 128>}, {pipeline_mode = #tpu.pipeline_mode<synchronous>, transform_indices = @transform_2, window_bounds = array<i64: 1, 128>}, {transform_indices = @transform_3, window_bounds = array<i64: 2, 16, 128>}]} {
    %c0 = arith.constant 0 : index
    %c0_0 = arith.constant 0 : index
    %0 = vector.load %arg3[%c0, %c0_0] : memref<1x128xf32, #tpu.memory_space<vmem>>, vector<1x128xf32>
    %1 = vector.shape_cast %0 : vector<1x128xf32> to vector<1x128xf32>
    %2 = vector.broadcast %1 : vector<1x128xf32> to vector<16x128xf32>
    %c0_1 = arith.constant 0 : index
    %c0_2 = arith.constant 0 : index
    %c0_3 = arith.constant 0 : index
    %3 = vector.load %arg1[%c0_1, %c0_2, %c0_3] : memref<2x18x72xbf16, #tpu.memory_space<vmem>>, vector<1x16x72xbf16>
    %4 = vector.shape_cast %3 : vector<1x16x72xbf16> to vector<16x72xbf16>
    %c0_4 = arith.constant 0 : index
    %c0_5 = arith.constant 0 : index
    %c0_6 = arith.constant 0 : index
    %5 = vector.load %arg2[%c0_4, %c0_5, %c0_6] : memref<3x72x128xbf16, #tpu.memory_space<vmem>>, vector<1x72x128xbf16>
    %6 = vector.shape_cast %5 : vector<1x72x128xbf16> to vector<72x128xbf16>
    %cst = arith.constant dense<0.000000e+00> : vector<16x128xf32>
    %7 = tpu.matmul %4, %6, %cst {dimension_numbers = #tpu.dot_dimension_numbers<[1], [0], [0], [1], [0, 0, 1, 1], [], []>} : vector<16x72xbf16>, vector<72x128xbf16>, vector<16x128xf32> -> vector<16x128xf32>
    %8 = arith.addf %2, %7 : vector<16x128xf32>
    %c0_7 = arith.constant 0 : index
    %c1 = arith.constant 1 : index
    %c0_8 = arith.constant 0 : index
    %9 = vector.load %arg1[%c0_7, %c1, %c0_8] : memref<2x18x72xbf16, #tpu.memory_space<vmem>>, vector<1x16x72xbf16>
    %10 = vector.shape_cast %9 : vector<1x16x72xbf16> to vector<16x72xbf16>
    %c1_9 = arith.constant 1 : index
    %c0_10 = arith.constant 0 : index
    %c0_11 = arith.constant 0 : index
    %11 = vector.load %arg2[%c1_9, %c0_10, %c0_11] : memref<3x72x128xbf16, #tpu.memory_space<vmem>>, vector<1x72x128xbf16>
    %12 = vector.shape_cast %11 : vector<1x72x128xbf16> to vector<72x128xbf16>
    %cst_12 = arith.constant dense<0.000000e+00> : vector<16x128xf32>
    %13 = tpu.matmul %10, %12, %cst_12 {dimension_numbers = #tpu.dot_dimension_numbers<[1], [0], [0], [1], [0, 0, 1, 1], [], []>} : vector<16x72xbf16>, vector<72x128xbf16>, vector<16x128xf32> -> vector<16x128xf32>
    %14 = arith.addf %8, %13 : vector<16x128xf32>
    %c0_13 = arith.constant 0 : index
    %c2 = arith.constant 2 : index
    %c0_14 = arith.constant 0 : index
    %15 = vector.load %arg1[%c0_13, %c2, %c0_14] : memref<2x18x72xbf16, #tpu.memory_space<vmem>>, vector<1x16x72xbf16>
    %16 = vector.shape_cast %15 : vector<1x16x72xbf16> to vector<16x72xbf16>
    %c2_15 = arith.constant 2 : index
    %c0_16 = arith.constant 0 : index
    %c0_17 = arith.constant 0 : index
    %17 = vector.load %arg2[%c2_15, %c0_16, %c0_17] : memref<3x72x128xbf16, #tpu.memory_space<vmem>>, vector<1x72x128xbf16>
    %18 = vector.shape_cast %17 : vector<1x72x128xbf16> to vector<72x128xbf16>
    %cst_18 = arith.constant dense<0.000000e+00> : vector<16x128xf32>
    %19 = tpu.matmul %16, %18, %cst_18 {dimension_numbers = #tpu.dot_dimension_numbers<[1], [0], [0], [1], [0, 0, 1, 1], [], []>} : vector<16x72xbf16>, vector<72x128xbf16>, vector<16x128xf32> -> vector<16x128xf32>
    %20 = arith.addf %14, %19 : vector<16x128xf32>
    %cst_19 = arith.constant 0.000000e+00 : f32
    %21 = vector.broadcast %cst_19 : f32 to vector<16x128xf32>
    %22 = arith.maximumf %20, %21 : vector<16x128xf32>
    %c0_20 = arith.constant 0 : index
    %c0_21 = arith.constant 0 : index
    %c0_22 = arith.constant 0 : index
    %23 = vector.load %arg4[%c0_20, %c0_21, %c0_22] : memref<2x16x128xf32, #tpu.memory_space<vmem>>, vector<1x16x128xf32>
    %24 = vector.shape_cast %23 : vector<1x16x128xf32> to vector<16x128xf32>
    %25 = vector.shape_cast %22 : vector<16x128xf32> to vector<1x16x128xf32>
    tpu.vector_store %arg4[%c0_20, %c0_21, %c0_22], %25 {strides = array<i32>} : memref<2x16x128xf32, #tpu.memory_space<vmem>>, vector<1x16x128xf32>,
    %c1_23 = arith.constant 1 : index
    %c0_24 = arith.constant 0 : index
    %c0_25 = arith.constant 0 : index
    %26 = vector.load %arg1[%c1_23, %c0_24, %c0_25] : memref<2x18x72xbf16, #tpu.memory_space<vmem>>, vector<1x16x72xbf16>
    %27 = vector.shape_cast %26 : vector<1x16x72xbf16> to vector<16x72xbf16>
    %c0_26 = arith.constant 0 : index
    %c0_27 = arith.constant 0 : index
    %c0_28 = arith.constant 0 : index
    %28 = vector.load %arg2[%c0_26, %c0_27, %c0_28] : memref<3x72x128xbf16, #tpu.memory_space<vmem>>, vector<1x72x128xbf16>
    %29 = vector.shape_cast %28 : vector<1x72x128xbf16> to vector<72x128xbf16>
    %cst_29 = arith.constant dense<0.000000e+00> : vector<16x128xf32>
    %30 = tpu.matmul %27, %29, %cst_29 {dimension_numbers = #tpu.dot_dimension_numbers<[1], [0], [0], [1], [0, 0, 1, 1], [], []>} : vector<16x72xbf16>, vector<72x128xbf16>, vector<16x128xf32> -> vector<16x128xf32>
    %31 = arith.addf %2, %30 : vector<16x128xf32>
    %c1_30 = arith.constant 1 : index
    %c1_31 = arith.constant 1 : index
    %c0_32 = arith.constant 0 : index
    %32 = vector.load %arg1[%c1_30, %c1_31, %c0_32] : memref<2x18x72xbf16, #tpu.memory_space<vmem>>, vector<1x16x72xbf16>
    %33 = vector.shape_cast %32 : vector<1x16x72xbf16> to vector<16x72xbf16>
    %c1_33 = arith.constant 1 : index
    %c0_34 = arith.constant 0 : index
    %c0_35 = arith.constant 0 : index
    %34 = vector.load %arg2[%c1_33, %c0_34, %c0_35] : memref<3x72x128xbf16, #tpu.memory_space<vmem>>, vector<1x72x128xbf16>
    %35 = vector.shape_cast %34 : vector<1x72x128xbf16> to vector<72x128xbf16>
    %cst_36 = arith.constant dense<0.000000e+00> : vector<16x128xf32>
    %36 = tpu.matmul %33, %35, %cst_36 {dimension_numbers = #tpu.dot_dimension_numbers<[1], [0], [0], [1], [0, 0, 1, 1], [], []>} : vector<16x72xbf16>, vector<72x128xbf16>, vector<16x128xf32> -> vector<16x128xf32>
    %37 = arith.addf %31, %36 : vector<16x128xf32>
    %c1_37 = arith.constant 1 : index
    %c2_38 = arith.constant 2 : index
    %c0_39 = arith.constant 0 : index
    %38 = vector.load %arg1[%c1_37, %c2_38, %c0_39] : memref<2x18x72xbf16, #tpu.memory_space<vmem>>, vector<1x16x72xbf16>
    %39 = vector.shape_cast %38 : vector<1x16x72xbf16> to vector<16x72xbf16>
    %c2_40 = arith.constant 2 : index
    %c0_41 = arith.constant 0 : index
    %c0_42 = arith.constant 0 : index
    %40 = vector.load %arg2[%c2_40, %c0_41, %c0_42] : memref<3x72x128xbf16, #tpu.memory_space<vmem>>, vector<1x72x128xbf16>
    %41 = vector.shape_cast %40 : vector<1x72x128xbf16> to vector<72x128xbf16>
    %cst_43 = arith.constant dense<0.000000e+00> : vector<16x128xf32>
    %42 = tpu.matmul %39, %41, %cst_43 {dimension_numbers = #tpu.dot_dimension_numbers<[1], [0], [0], [1], [0, 0, 1, 1], [], []>} : vector<16x72xbf16>, vector<72x128xbf16>, vector<16x128xf32> -> vector<16x128xf32>
    %43 = arith.addf %37, %42 : vector<16x128xf32>
    %cst_44 = arith.constant 0.000000e+00 : f32
    %44 = vector.broadcast %cst_44 : f32 to vector<16x128xf32>
    %45 = arith.maximumf %43, %44 : vector<16x128xf32>
    %c1_45 = arith.constant 1 : index
    %c0_46 = arith.constant 0 : index
    %c0_47 = arith.constant 0 : index
    %46 = vector.load %arg4[%c1_45, %c0_46, %c0_47] : memref<2x16x128xf32, #tpu.memory_space<vmem>>, vector<1x16x128xf32>
    %47 = vector.shape_cast %46 : vector<1x16x128xf32> to vector<16x128xf32>
    %48 = vector.shape_cast %45 : vector<16x128xf32> to vector<1x16x128xf32>
    tpu.vector_store %arg4[%c1_45, %c0_46, %c0_47], %48 {strides = array<i32>} : memref<2x16x128xf32, #tpu.memory_space<vmem>>, vector<1x16x128xf32>,
    return
  }
  func.func @transform_0(%arg0: i32) -> (i32, i32, i32) {
    %c0_i32 = arith.constant 0 : i32
    %c0_i32_0 = arith.constant 0 : i32
    %c0_i32_1 = arith.constant 0 : i32
    return %arg0, %c0_i32, %c0_i32_0 : i32, i32, i32
  }
  func.func @transform_1(%arg0: i32) -> (i32, i32, i32) {
    %c0_i32 = arith.constant 0 : i32
    %c0_i32_0 = arith.constant 0 : i32
    %c0_i32_1 = arith.constant 0 : i32
    %c0_i32_2 = arith.constant 0 : i32
    return %c0_i32, %c0_i32_0, %c0_i32_1 : i32, i32, i32
  }
  func.func @transform_2(%arg0: i32) -> (i32, i32) {
    %c0_i32 = arith.constant 0 : i32
    %c0_i32_0 = arith.constant 0 : i32
    %c0_i32_1 = arith.constant 0 : i32
    return %c0_i32, %c0_i32_0 : i32, i32
  }
  func.func @transform_3(%arg0: i32) -> (i32, i32, i32) {
    %c0_i32 = arith.constant 0 : i32
    %c0_i32_0 = arith.constant 0 : i32
    %c0_i32_1 = arith.constant 0 : i32
    return %arg0, %c0_i32, %c0_i32_0 : i32, i32, i32
  }
}

</mosaic_0001>

<llo_original>
// kernel: tpu_custom_call.1
$region0: #{tpu_custom_call.1}
  #allocation0 [shape = 'u32[]', space=smem, size = 0x4, offset = 0x4, fixed_abs, tag = 'smem constant byte address 0x4 - core index']
  #allocation1 [shape = 'u32[144,128]{1,0:T(1,128)}', space=vmem, size = 0x12000, scoped, tag = 'internal scratch']
  %s0 = inlined_call_operand.vmem [shape: bf16[2,18,72], index: 0, kind: input, shape index: {}]
  %s1 = inlined_call_operand.hbm [shape: bf16[3,72,128], index: 1, kind: input, shape index: {}]
  %s2 = inlined_call_operand.vmem [shape: f32[1,128], index: 2, kind: input, shape index: {}]
  %s3 = inlined_call_operand.hbm [shape: f32[2,16,128], index: 3, kind: output, shape index: {}]
  %s4 = sld [smem:[#allocation0]]
  $region26: #{tpu_custom_call.1} parent=0
    _
  %s6 = ssub.s32 1, %s4
  %s7 = scalar_select 0, %s6, %s4
  $region1: #{tpu_custom_call.1} parent=0
    #allocation2 [shape = 'u8[55296]{0}', space=vmem, size = 0xd800, scoped, tag = 'input window, operand 1, single buffered']
    #allocation3 [shape = 's32[1]{0}', space=sflag, size = 0x4, scoped, tag = 'scoped memory for tpu_custom_call.1']
    #allocation4 [shape = 's32[1]{0}', space=sflag, size = 0x4, scoped, tag = 'scoped memory for tpu_custom_call.1']
    #allocation5 [shape = 'u8[16384]{0}', space=vmem, size = 0x4000, scoped, tag = 'output window, operand 0, single buffered']
    %8 = vsyncpa [#allocation3], 0
    %9 = vsyncpa [#allocation4], 0
    // Predicated region
    $region2: #{tpu_custom_call.1} parent=1 // pred_check
      _
    $region3: #{tpu_custom_call.1} parent=1 // pred_check_branch
      %11 = sbr.rel (0) target = $region5
    $region4: #{tpu_custom_call.1} parent=1 // pred_region
      _
    $region5: #{tpu_custom_call.1} parent=1 // pred_fallthru
      _
    // Predicated region
    $region6: #{tpu_custom_call.1} parent=1 // pred_check
      _
    $region7: #{tpu_custom_call.1} parent=1 // pred_check_branch
      %13 = sbr.rel (0) target = $region9
    $region8: #{tpu_custom_call.1} parent=1 // pred_region
      %s15 = ssub.s32 1728, 1728
      %16 = vsyncadd [#allocation3], %s15
      %s17 = sshll.u32 [#allocation2], 4
      %s18 = int_to_ptr.vmem [resolvable:$true] %s17
      %23 = dma.hbm_to_vmem [thread:$0]  %s1, 1728, %s18, [#allocation3], 64, 64, 4
    $region9: #{tpu_custom_call.1} parent=1 // pred_fallthru
      _
    // Predicated region
    $region10: #{tpu_custom_call.1} parent=1 // pred_check
      _
    $region11: #{tpu_custom_call.1} parent=1 // pred_check_branch
      %25 = sbr.rel (0) target = $region13
    $region12: #{tpu_custom_call.1} parent=1 // pred_region
      _
    $region13: #{tpu_custom_call.1} parent=1 // pred_fallthru
      _
    // Predicated region
    $region14: #{tpu_custom_call.1} parent=1 // pred_check
      _
    $region15: #{tpu_custom_call.1} parent=1 // pred_check_branch
      %27 = sbr.rel (0) target = $region17
    $region16: #{tpu_custom_call.1} parent=1 // pred_region
      %28 = dma.done [#allocation3], 1728
    $region17: #{tpu_custom_call.1} parent=1 // pred_fallthru
      _
    %v30 = vld [vmem:[%s2] sm:$0x1]
    %v32 = vlaneseq
    %v33 = vshrl.u32 %v32, 7
    %v34 = vsub.s32 0, %v33
    %v35 = vrot.slane %v30, %v34
    %v37 = vld [vmem:[%s0] sm:$0xf]
    %v38 = vld [vmem:[%s0 + $0x4] sm:$0xf]
    %v39 = vld [vmem:[#allocation2] sm:$0xf]
    %v40 = vld [vmem:[#allocation2 + $0x4] sm:$0xf]
    %v41 = vld [vmem:[#allocation2 + $0x8] sm:$0xf]
    %v42 = vld [vmem:[#allocation2 + $0xc] sm:$0xf]
    %v43 = vld [vmem:[#allocation2 + $0x10] sm:$0xf]
    %v44 = vld [vmem:[#allocation2 + $0x14] sm:$0xf]
    %v45 = vld [vmem:[#allocation2 + $0x18] sm:$0xf]
    %v46 = vld [vmem:[#allocation2 + $0x1c] sm:$0xf]
    %v47 = vld [vmem:[#allocation2 + $0x20] sm:$0xf]
    %v50 = vunpack.c.l.b16 %v37
    %v51 = vunpack.c.l.b16 %v38
    %v52 = vpack.c.b16 %v51, %v50
    %v62 = vunpack.c.l.b16 %v39
    %v63 = vunpack.c.l.b16 %v40
    %v64 = vunpack.c.l.b16 %v41
    %v65 = vunpack.c.l.b16 %v42
    %v66 = vunpack.c.l.b16 %v43
    %v67 = vunpack.c.l.b16 %v44
    %v68 = vunpack.c.l.b16 %v45
    %v69 = vunpack.c.l.b16 %v46
    %v70 = vunpack.c.l.b16 %v47
    %v71 = vpack.c.b16 %v63, %v62
    %v72 = vpack.c.b16 %v65, %v64
    %v73 = vpack.c.b16 %v67, %v66
    %v74 = vpack.c.b16 %v69, %v68
    %v75 = vpack.c.b16 %v70, %v70
    %vm80 = vcmask 588800
    %v82 = vsel %vm80, %v52, 0
    %vm84 = vcmask 1043456
    %v86 = vsel %vm84, %v75, 0
    %88 = vmatprep.subr.bf16.mxu0 0
    %89 = vmatpush1.bf16.msra.mxu0 %v71
    %90 = vmatprep.subr.bf16.mxu0 0
    %91 = vmatpush1.bf16.msra.mxu0 %v72
    %92 = vmatprep.subr.bf16.mxu0 0
    %93 = vmatpush1.bf16.msra.mxu0 %v73
    %94 = vmatprep.subr.bf16.mxu0 0
    %95 = vmatpush1.bf16.msra.mxu0 %v74
    %96 = vmatprep.subr.bf16.mxu0 0
    %97 = vmatpush1.bf16.msra.mxu0 %v86
    %98 = vmatprep.subr.bf16.mxu0 0
    %99 = vmatpush1.bf16.msra.mxu0 0
    %100 = vmatprep.subr.bf16.mxu0 0
    %101 = vmatpush1.bf16.msra.mxu0 0
    %102 = vmatprep.subr.bf16.mxu0 0
    %103 = vmatpush1.bf16.msra.mxu0 0
    %104 = vmatprep.subr.bf16.mxu0 0
    %105 = vmatpush1.bf16.msra.mxu0 0
    %106 = vmatprep.subr.bf16.mxu0 0
    %107 = vmatpush1.bf16.msra.mxu0 0
    %108 = vmatprep.subr.bf16.mxu0 0
    %109 = vmatpush1.bf16.msra.mxu0 0
    %110 = vmatprep.subr.bf16.mxu0 0
    %111 = vmatpush1.bf16.msra.mxu0 0
    %112 = vmatprep.subr.bf16.mxu0 0
    %113 = vmatpush1.bf16.msra.mxu0 0
    %114 = vmatprep.subr.bf16.mxu0 0
    %115 = vmatpush1.bf16.msra.mxu0 0
    %116 = vmatprep.subr.bf16.mxu0 0
    %117 = vmatpush1.bf16.msra.mxu0 0
    %118 = vmatprep.subr.bf16.mxu0 0
    %119 = vmatpush1.bf16.msra.mxu0 0
    %120 = vmatprep.mubr.bf16.mxu0 0
    %121 = vmatmul.mubr.bf16.gmra.mrb[0].mxu0 %v82
    %v122 = vpop.f32.mrb[0].mxu0
    %v123 = vadd.f32 0.0, %v122
    %v124 = vpop.f32.mrb[0].mxu0
    %v125 = vpop.f32.mrb[0].mxu0
    %v126 = vadd.f32 0.0, %v125
    %v127 = vpop.f32.mrb[0].mxu0
    %128 = vdwg.mxu0
    %v129 = vadd.f32 %v35, %v123
    %v130 = vadd.f32 %v35, %v126
    %v131 = vld [vmem:[%s0] sm:$0xf]
    %v132 = vld [vmem:[%s0 + $0x4] sm:$0xf]
    %v133 = vld [vmem:[%s0 + $0x8] sm:$0x1]
    %s134 = scalar_lea.vmem [#allocation2], 36
    %v135 = vld [vmem:[%s134] sm:$0xf]
    %v136 = vld [vmem:[%s134 + $0x4] sm:$0xf]
    %v137 = vld [vmem:[%s134 + $0x8] sm:$0xf]
    %v138 = vld [vmem:[%s134 + $0xc] sm:$0xf]
    %v139 = vld [vmem:[%s134 + $0x10] sm:$0xf]
    %v140 = vld [vmem:[%s134 + $0x14] sm:$0xf]
    %v141 = vld [vmem:[%s134 + $0x18] sm:$0xf]
    %v142 = vld [vmem:[%s134 + $0x1c] sm:$0xf]
    %v143 = vld [vmem:[%s134 + $0x20] sm:$0xf]
    %v147 = vunpack.c.l.b16 %v131
    %v148 = vunpack.c.l.b16 %v132
    %v149 = vunpack.c.l.b16 %v133
    %v150 = vpack.c.b16 %v148, %v147
    %v151 = vpack.c.b16 %v149, %v149
    %vm152 = vsmask.f32 7424
    %v154 = vshrl.u32 %v150, 16
    %v156 = vshll.u32 %v150, 16
    %v158 = vrot.slane %v156, 1
    %v159 = vor.u32 %v154, %v158
    %v161 = vshll.u32 %v151, 16
    %v163 = vrot.slane %v161, 1
    %v164 = vsel %vm152, %v159, %v163
    %v174 = vunpack.c.l.b16 %v135
    %v175 = vunpack.c.l.b16 %v136
    %v176 = vunpack.c.l.b16 %v137
    %v177 = vunpack.c.l.b16 %v138
    %v178 = vunpack.c.l.b16 %v139
    %v179 = vunpack.c.l.b16 %v140
    %v180 = vunpack.c.l.b16 %v141
    %v181 = vunpack.c.l.b16 %v142
    %v182 = vunpack.c.l.b16 %v143
    %v183 = vpack.c.b16 %v175, %v174
    %v184 = vpack.c.b16 %v177, %v176
    %v185 = vpack.c.b16 %v179, %v178
    %v186 = vpack.c.b16 %v181, %v180
    %v187 = vpack.c.b16 %v182, %v182
    %v193 = vsel %vm80, %v164, 0
    %v196 = vsel %vm84, %v187, 0
    %198 = vmatprep.subr.bf16.mxu0 0
    %199 = vmatpush1.bf16.msra.mxu0 %v183
    %200 = vmatprep.subr.bf16.mxu0 0
    %201 = vmatpush1.bf16.msra.mxu0 %v184
    %202 = vmatprep.subr.bf16.mxu0 0
    %203 = vmatpush1.bf16.msra.mxu0 %v185
    %204 = vmatprep.subr.bf16.mxu0 0
    %205 = vmatpush1.bf16.msra.mxu0 %v186
    %206 = vmatprep.subr.bf16.mxu0 0
    %207 = vmatpush1.bf16.msra.mxu0 %v196
    %208 = vmatprep.subr.bf16.mxu0 0
    %209 = vmatpush1.bf16.msra.mxu0 0
    %210 = vmatprep.subr.bf16.mxu0 0
    %211 = vmatpush1.bf16.msra.mxu0 0
    %212 = vmatprep.subr.bf16.mxu0 0
    %213 = vmatpush1.bf16.msra.mxu0 0
    %214 = vmatprep.subr.bf16.mxu0 0
    %215 = vmatpush1.bf16.msra.mxu0 0
    %216 = vmatprep.subr.bf16.mxu0 0
    %217 = vmatpush1.bf16.msra.mxu0 0
    %218 = vmatprep.subr.bf16.mxu0 0
    %219 = vmatpush1.bf16.msra.mxu0 0
    %220 = vmatprep.subr.bf16.mxu0 0
    %221 = vmatpush1.bf16.msra.mxu0 0
    %222 = vmatprep.subr.bf16.mxu0 0
    %223 = vmatpush1.bf16.msra.mxu0 0
    %224 = vmatprep.subr.bf16.mxu0 0
    %225 = vmatpush1.bf16.msra.mxu0 0
    %226 = vmatprep.subr.bf16.mxu0 0
    %227 = vmatpush1.bf16.msra.mxu0 0
    %228 = vmatprep.subr.bf16.mxu0 0
    %229 = vmatpush1.bf16.msra.mxu0 0
    %230 = vmatprep.mubr.bf16.mxu0 0
    %231 = vmatmul.mubr.bf16.gmra.mrb[0].mxu0 %v193
    %v232 = vpop.f32.mrb[0].mxu0
    %v233 = vadd.f32 0.0, %v232
    %v234 = vpop.f32.mrb[0].mxu0
    %v235 = vpop.f32.mrb[0].mxu0
    %v236 = vadd.f32 0.0, %v235
    %v237 = vpop.f32.mrb[0].mxu0
    %238 = vdwg.mxu0
    %v239 = vadd.f32 %v129, %v233
    %v240 = vadd.f32 %v130, %v236
    %v241 = vld [vmem:[%s0] sm:$0xe]
    %s242 = scalar_lea.vmem [#allocation2], 72
    %v243 = vld [vmem:[%s242] sm:$0xf]
    %v244 = vld [vmem:[%s242 + $0x4] sm:$0xf]
    %v245 = vld [vmem:[%s242 + $0x8] sm:$0xf]
    %v246 = vld [vmem:[%s242 + $0xc] sm:$0xf]
    %v247 = vld [vmem:[%s242 + $0x10] sm:$0xf]
    %v248 = vld [vmem:[%s242 + $0x14] sm:$0xf]
    %v249 = vld [vmem:[%s242 + $0x18] sm:$0xf]
    %v250 = vld [vmem:[%s242 + $0x1c] sm:$0xf]
    %v251 = vld [vmem:[%s242 + $0x20] sm:$0xf]
    %v253 = vunpack.c.l.b16 %v241
    %v254 = vpack.c.b16 %v148, %v253
    %vm255 = vcmask 1046528
    %v256 = vrot.slane %v254, 1
    %v257 = vrot.slane %v151, 1
    %v258 = vsel %vm255, %v256, %v257
    %v268 = vunpack.c.l.b16 %v243
    %v269 = vunpack.c.l.b16 %v244
    %v270 = vunpack.c.l.b16 %v245
    %v271 = vunpack.c.l.b16 %v246
    %v272 = vunpack.c.l.b16 %v247
    %v273 = vunpack.c.l.b16 %v248
    %v274 = vunpack.c.l.b16 %v249
    %v275 = vunpack.c.l.b16 %v250
    %v276 = vunpack.c.l.b16 %v251
    %v277 = vpack.c.b16 %v269, %v268
    %v278 = vpack.c.b16 %v271, %v270
    %v279 = vpack.c.b16 %v273, %v272
    %v280 = vpack.c.b16 %v275, %v274
    %v281 = vpack.c.b16 %v276, %v276
    %v287 = vsel %vm80, %v258, 0
    %v290 = vsel %vm84, %v281, 0
    %292 = vmatprep.subr.bf16.mxu0 0
    %293 = vmatpush1.bf16.msra.mxu0 %v277
    %294 = vmatprep.subr.bf16.mxu0 0
    %295 = vmatpush1.bf16.msra.mxu0 %v278
    %296 = vmatprep.subr.bf16.mxu0 0
    %297 = vmatpush1.bf16.msra.mxu0 %v279
    %298 = vmatprep.subr.bf16.mxu0 0
    %299 = vmatpush1.bf16.msra.mxu0 %v280
    %300 = vmatprep.subr.bf16.mxu0 0
    %301 = vmatpush1.bf16.msra.mxu0 %v290
    %302 = vmatprep.subr.bf16.mxu0 0
    %303 = vmatpush1.bf16.msra.mxu0 0
    %304 = vmatprep.subr.bf16.mxu0 0
    %305 = vmatpush1.bf16.msra.mxu0 0
    %306 = vmatprep.subr.bf16.mxu0 0
    %307 = vmatpush1.bf16.msra.mxu0 0
    %308 = vmatprep.subr.bf16.mxu0 0
    %309 = vmatpush1.bf16.msra.mxu0 0
    %310 = vmatprep.subr.bf16.mxu0 0
    %311 = vmatpush1.bf16.msra.mxu0 0
    %312 = vmatprep.subr.bf16.mxu0 0
    %313 = vmatpush1.bf16.msra.mxu0 0
    %314 = vmatprep.subr.bf16.mxu0 0
    %315 = vmatpush1.bf16.msra.mxu0 0
    %316 = vmatprep.subr.bf16.mxu0 0
    %317 = vmatpush1.bf16.msra.mxu0 0
    %318 = vmatprep.subr.bf16.mxu0 0
    %319 = vmatpush1.bf16.msra.mxu0 0
    %320 = vmatprep.subr.bf16.mxu0 0
    %321 = vmatpush1.bf16.msra.mxu0 0
    %322 = vmatprep.subr.bf16.mxu0 0
    %323 = vmatpush1.bf16.msra.mxu0 0
    %324 = vmatprep.mubr.bf16.mxu0 0
    %325 = vmatmul.mubr.bf16.gmra.mrb[0].mxu0 %v287
    %v326 = vpop.f32.mrb[0].mxu0
    %v327 = vadd.f32 0.0, %v326
    %v328 = vpop.f32.mrb[0].mxu0
    %v329 = vpop.f32.mrb[0].mxu0
    %v330 = vadd.f32 0.0, %v329
    %v331 = vpop.f32.mrb[0].mxu0
    %332 = vdwg.mxu0
    %v333 = vadd.f32 %v239, %v327
    %v334 = vadd.f32 %v240, %v330
    %v335 = vmax.f32 %v333, 0.0
    %v336 = vmax.f32 %v334, 0.0
    %337 = vst [vmem:[#allocation5] sm:$0xff] %v335
    %338 = vst [vmem:[#allocation5 + $0x8] sm:$0xff] %v336
    %s339 = scalar_lea.vmem %s0, 12
    %v340 = vld [vmem:[%s339] sm:$0xf]
    %v341 = vld [vmem:[%s339 + $0x4] sm:$0xf]
    %v342 = vld [vmem:[#allocation2] sm:$0xf]
    %v343 = vld [vmem:[#allocation2 + $0x4] sm:$0xf]
    %v344 = vld [vmem:[#allocation2 + $0x8] sm:$0xf]
    %v345 = vld [vmem:[#allocation2 + $0xc] sm:$0xf]
    %v346 = vld [vmem:[#allocation2 + $0x10] sm:$0xf]
    %v347 = vld [vmem:[#allocation2 + $0x14] sm:$0xf]
    %v348 = vld [vmem:[#allocation2 + $0x18] sm:$0xf]
    %v349 = vld [vmem:[#allocation2 + $0x1c] sm:$0xf]
    %v350 = vld [vmem:[#allocation2 + $0x20] sm:$0xf]
    %v353 = vunpack.c.l.b16 %v340
    %v354 = vunpack.c.l.b16 %v341
    %v355 = vpack.c.b16 %v354, %v353
    %v365 = vunpack.c.l.b16 %v342
    %v366 = vunpack.c.l.b16 %v343
    %v367 = vunpack.c.l.b16 %v344
    %v368 = vunpack.c.l.b16 %v345
    %v369 = vunpack.c.l.b16 %v346
    %v370 = vunpack.c.l.b16 %v347
    %v371 = vunpack.c.l.b16 %v348
    %v372 = vunpack.c.l.b16 %v349
    %v373 = vunpack.c.l.b16 %v350
    %v374 = vpack.c.b16 %v366, %v365
    %v375 = vpack.c.b16 %v368, %v367
    %v376 = vpack.c.b16 %v370, %v369
    %v377 = vpack.c.b16 %v372, %v371
    %v378 = vpack.c.b16 %v373, %v373
    %v384 = vsel %vm80, %v355, 0
    %v387 = vsel %vm84, %v378, 0
    %389 = vmatprep.subr.bf16.mxu0 0
    %390 = vmatpush1.bf16.msra.mxu0 %v374
    %391 = vmatprep.subr.bf16.mxu0 0
    %392 = vmatpush1.bf16.msra.mxu0 %v375
    %393 = vmatprep.subr.bf16.mxu0 0
    %394 = vmatpush1.bf16.msra.mxu0 %v376
    %395 = vmatprep.subr.bf16.mxu0 0
    %396 = vmatpush1.bf16.msra.mxu0 %v377
    %397 = vmatprep.subr.bf16.mxu0 0
    %398 = vmatpush1.bf16.msra.mxu0 %v387
    %399 = vmatprep.subr.bf16.mxu0 0
    %400 = vmatpush1.bf16.msra.mxu0 0
    %401 = vmatprep.subr.bf16.mxu0 0
    %402 = vmatpush1.bf16.msra.mxu0 0
    %403 = vmatprep.subr.bf16.mxu0 0
    %404 = vmatpush1.bf16.msra.mxu0 0
    %405 = vmatprep.subr.bf16.mxu0 0
    %406 = vmatpush1.bf16.msra.mxu0 0
    %407 = vmatprep.subr.bf16.mxu0 0
    %408 = vmatpush1.bf16.msra.mxu0 0
    %409 = vmatprep.subr.bf16.mxu0 0
    %410 = vmatpush1.bf16.msra.mxu0 0
    %411 = vmatprep.subr.bf16.mxu0 0
    %412 = vmatpush1.bf16.msra.mxu0 0
    %413 = vmatprep.subr.bf16.mxu0 0
    %414 = vmatpush1.bf16.msra.mxu0 0
    %415 = vmatprep.subr.bf16.mxu0 0
    %416 = vmatpush1.bf16.msra.mxu0 0
    %417 = vmatprep.subr.bf16.mxu0 0
    %418 = vmatpush1.bf16.msra.mxu0 0
    %419 = vmatprep.subr.bf16.mxu0 0
    %420 = vmatpush1.bf16.msra.mxu0 0
    %421 = vmatprep.mubr.bf16.mxu0 0
    %422 = vmatmul.mubr.bf16.gmra.mrb[0].mxu0 %v384
    %v423 = vpop.f32.mrb[0].mxu0
    %v424 = vadd.f32 0.0, %v423
    %v425 = vpop.f32.mrb[0].mxu0
    %v426 = vpop.f32.mrb[0].mxu0
    %v427 = vadd.f32 0.0, %v426
    %v428 = vpop.f32.mrb[0].mxu0
    %429 = vdwg.mxu0
    %v430 = vadd.f32 %v35, %v424
    %v431 = vadd.f32 %v35, %v427
    %v432 = vld [vmem:[%s339] sm:$0xf]
    %v433 = vld [vmem:[%s339 + $0x4] sm:$0xf]
    %v434 = vld [vmem:[%s339 + $0x8] sm:$0x1]
    %v435 = vld [vmem:[%s134] sm:$0xf]
    %v436 = vld [vmem:[%s134 + $0x4] sm:$0xf]
    %v437 = vld [vmem:[%s134 + $0x8] sm:$0xf]
    %v438 = vld [vmem:[%s134 + $0xc] sm:$0xf]
    %v439 = vld [vmem:[%s134 + $0x10] sm:$0xf]
    %v440 = vld [vmem:[%s134 + $0x14] sm:$0xf]
    %v441 = vld [vmem:[%s134 + $0x18] sm:$0xf]
    %v442 = vld [vmem:[%s134 + $0x1c] sm:$0xf]
    %v443 = vld [vmem:[%s134 + $0x20] sm:$0xf]
    %v447 = vunpack.c.l.b16 %v432
    %v448 = vunpack.c.l.b16 %v433
    %v449 = vunpack.c.l.b16 %v434
    %v450 = vpack.c.b16 %v448, %v447
    %v451 = vpack.c.b16 %v449, %v449
    %v453 = vshrl.u32 %v450, 16
    %v455 = vshll.u32 %v450, 16
    %v457 = vrot.slane %v455, 1
    %v458 = vor.u32 %v453, %v457
    %v460 = vshll.u32 %v451, 16
    %v462 = vrot.slane %v460, 1
    %v463 = vsel %vm152, %v458, %v462
    %v473 = vunpack.c.l.b16 %v435
    %v474 = vunpack.c.l.b16 %v436
    %v475 = vunpack.c.l.b16 %v437
    %v476 = vunpack.c.l.b16 %v438
    %v477 = vunpack.c.l.b16 %v439
    %v478 = vunpack.c.l.b16 %v440
    %v479 = vunpack.c.l.b16 %v441
    %v480 = vunpack.c.l.b16 %v442
    %v481 = vunpack.c.l.b16 %v443
    %v482 = vpack.c.b16 %v474, %v473
    %v483 = vpack.c.b16 %v476, %v475
    %v484 = vpack.c.b16 %v478, %v477
    %v485 = vpack.c.b16 %v480, %v479
    %v486 = vpack.c.b16 %v481, %v481
    %v492 = vsel %vm80, %v463, 0
    %v495 = vsel %vm84, %v486, 0
    %497 = vmatprep.subr.bf16.mxu0 0
    %498 = vmatpush1.bf16.msra.mxu0 %v482
    %499 = vmatprep.subr.bf16.mxu0 0
    %500 = vmatpush1.bf16.msra.mxu0 %v483
    %501 = vmatprep.subr.bf16.mxu0 0
    %502 = vmatpush1.bf16.msra.mxu0 %v484
    %503 = vmatprep.subr.bf16.mxu0 0
    %504 = vmatpush1.bf16.msra.mxu0 %v485
    %505 = vmatprep.subr.bf16.mxu0 0
    %506 = vmatpush1.bf16.msra.mxu0 %v495
    %507 = vmatprep.subr.bf16.mxu0 0
    %508 = vmatpush1.bf16.msra.mxu0 0
    %509 = vmatprep.subr.bf16.mxu0 0
    %510 = vmatpush1.bf16.msra.mxu0 0
    %511 = vmatprep.subr.bf16.mxu0 0
    %512 = vmatpush1.bf16.msra.mxu0 0
    %513 = vmatprep.subr.bf16.mxu0 0
    %514 = vmatpush1.bf16.msra.mxu0 0
    %515 = vmatprep.subr.bf16.mxu0 0
    %516 = vmatpush1.bf16.msra.mxu0 0
    %517 = vmatprep.subr.bf16.mxu0 0
    %518 = vmatpush1.bf16.msra.mxu0 0
    %519 = vmatprep.subr.bf16.mxu0 0
    %520 = vmatpush1.bf16.msra.mxu0 0
    %521 = vmatprep.subr.bf16.mxu0 0
    %522 = vmatpush1.bf16.msra.mxu0 0
    %523 = vmatprep.subr.bf16.mxu0 0
    %524 = vmatpush1.bf16.msra.mxu0 0
    %525 = vmatprep.subr.bf16.mxu0 0
    %526 = vmatpush1.bf16.msra.mxu0 0
    %527 = vmatprep.subr.bf16.mxu0 0
    %528 = vmatpush1.bf16.msra.mxu0 0
    %529 = vmatprep.mubr.bf16.mxu0 0
    %530 = vmatmul.mubr.bf16.gmra.mrb[0].mxu0 %v492
    %v531 = vpop.f32.mrb[0].mxu0
    %v532 = vadd.f32 0.0, %v531
    %v533 = vpop.f32.mrb[0].mxu0
    %v534 = vpop.f32.mrb[0].mxu0
    %v535 = vadd.f32 0.0, %v534
    %v536 = vpop.f32.mrb[0].mxu0
    %537 = vdwg.mxu0
    %v538 = vadd.f32 %v430, %v532
    %v539 = vadd.f32 %v431, %v535
    %v540 = vld [vmem:[%s339] sm:$0xe]
    %v541 = vld [vmem:[%s242] sm:$0xf]
    %v542 = vld [vmem:[%s242 + $0x4] sm:$0xf]
    %v543 = vld [vmem:[%s242 + $0x8] sm:$0xf]
    %v544 = vld [vmem:[%s242 + $0xc] sm:$0xf]
    %v545 = vld [vmem:[%s242 + $0x10] sm:$0xf]
    %v546 = vld [vmem:[%s242 + $0x14] sm:$0xf]
    %v547 = vld [vmem:[%s242 + $0x18] sm:$0xf]
    %v548 = vld [vmem:[%s242 + $0x1c] sm:$0xf]
    %v549 = vld [vmem:[%s242 + $0x20] sm:$0xf]
    %v551 = vunpack.c.l.b16 %v540
    %v552 = vpack.c.b16 %v448, %v551
    %v553 = vrot.slane %v552, 1
    %v554 = vrot.slane %v451, 1
    %v555 = vsel %vm255, %v553, %v554
    %v565 = vunpack.c.l.b16 %v541
    %v566 = vunpack.c.l.b16 %v542
    %v567 = vunpack.c.l.b16 %v543
    %v568 = vunpack.c.l.b16 %v544
    %v569 = vunpack.c.l.b16 %v545
    %v570 = vunpack.c.l.b16 %v546
    %v571 = vunpack.c.l.b16 %v547
    %v572 = vunpack.c.l.b16 %v548
    %v573 = vunpack.c.l.b16 %v549
    %v574 = vpack.c.b16 %v566, %v565
    %v575 = vpack.c.b16 %v568, %v567
    %v576 = vpack.c.b16 %v570, %v569
    %v577 = vpack.c.b16 %v572, %v571
    %v578 = vpack.c.b16 %v573, %v573
    %v584 = vsel %vm80, %v555, 0
    %v587 = vsel %vm84, %v578, 0
    %589 = vmatprep.subr.bf16.mxu0 0
    %590 = vmatpush1.bf16.msra.mxu0 %v574
    %591 = vmatprep.subr.bf16.mxu0 0
    %592 = vmatpush1.bf16.msra.mxu0 %v575
    %593 = vmatprep.subr.bf16.mxu0 0
    %594 = vmatpush1.bf16.msra.mxu0 %v576
    %595 = vmatprep.subr.bf16.mxu0 0
    %596 = vmatpush1.bf16.msra.mxu0 %v577
    %597 = vmatprep.subr.bf16.mxu0 0
    %598 = vmatpush1.bf16.msra.mxu0 %v587
    %599 = vmatprep.subr.bf16.mxu0 0
    %600 = vmatpush1.bf16.msra.mxu0 0
    %601 = vmatprep.subr.bf16.mxu0 0
    %602 = vmatpush1.bf16.msra.mxu0 0
    %603 = vmatprep.subr.bf16.mxu0 0
    %604 = vmatpush1.bf16.msra.mxu0 0
    %605 = vmatprep.subr.bf16.mxu0 0
    %606 = vmatpush1.bf16.msra.mxu0 0
    %607 = vmatprep.subr.bf16.mxu0 0
    %608 = vmatpush1.bf16.msra.mxu0 0
    %609 = vmatprep.subr.bf16.mxu0 0
    %610 = vmatpush1.bf16.msra.mxu0 0
    %611 = vmatprep.subr.bf16.mxu0 0
    %612 = vmatpush1.bf16.msra.mxu0 0
    %613 = vmatprep.subr.bf16.mxu0 0
    %614 = vmatpush1.bf16.msra.mxu0 0
    %615 = vmatprep.subr.bf16.mxu0 0
    %616 = vmatpush1.bf16.msra.mxu0 0
    %617 = vmatprep.subr.bf16.mxu0 0
    %618 = vmatpush1.bf16.msra.mxu0 0
    %619 = vmatprep.subr.bf16.mxu0 0
    %620 = vmatpush1.bf16.msra.mxu0 0
    %621 = vmatprep.mubr.bf16.mxu0 0
    %622 = vmatmul.mubr.bf16.gmra.mrb[0].mxu0 %v584
    %v623 = vpop.f32.mrb[0].mxu0
    %v624 = vadd.f32 0.0, %v623
    %v625 = vpop.f32.mrb[0].mxu0
    %v626 = vpop.f32.mrb[0].mxu0
    %v627 = vadd.f32 0.0, %v626
    %v628 = vpop.f32.mrb[0].mxu0
    %629 = vdwg.mxu0
    %v630 = vadd.f32 %v538, %v624
    %v631 = vadd.f32 %v539, %v627
    %v632 = vmax.f32 %v630, 0.0
    %v633 = vmax.f32 %v631, 0.0
    %s634 = scalar_lea.vmem [#allocation5], 16
    %635 = vst [vmem:[%s634] sm:$0xff] %v632
    %636 = vst [vmem:[%s634 + $0x8] sm:$0xff] %v633
    // Predicated region
    $region18: #{tpu_custom_call.1} parent=1 // pred_check
      _
    $region19: #{tpu_custom_call.1} parent=1 // pred_check_branch
      %638 = sbr.rel (0) target = $region21
    $region20: #{tpu_custom_call.1} parent=1 // pred_region
      %s640 = ssub.s32 512, 512
      %641 = vsyncadd [#allocation4], %s640
      %s642 = sshll.u32 [#allocation5], 4
      %s643 = int_to_ptr.vmem [resolvable:$true] %s642
      %648 = dma.vmem_to_hbm [thread:$0]  %s643, 512, %s3, [#allocation4], 128, 128, 8
    $region21: #{tpu_custom_call.1} parent=1 // pred_fallthru
      _
    // Predicated region
    $region22: #{tpu_custom_call.1} parent=1 // pred_check
      _
    $region23: #{tpu_custom_call.1} parent=1 // pred_check_branch
      %650 = sbr.rel (0) target = $region25
    $region24: #{tpu_custom_call.1} parent=1 // pred_region
      %651 = dma.done [#allocation4], 512
    $region25: #{tpu_custom_call.1} parent=1 // pred_fallthru
      _
    %652 = vsyncpa [#allocation3], 1
    %653 = vsyncpa [#allocation4], 1

</llo_original>
